<compile_context>
chip_gen: v7x
topology: tpu7x:2x2x1
jax: 0.10.0
libtpu: 0.0.40
codegen_flags: <defaults>
</compile_context>

<pallas_src>
import functools

import numpy as np
import jax
import jax.numpy as jnp
from jax.experimental import pallas as pl
from jax.experimental.pallas import tpu as pltpu


def _conv_band_matrices(w_oihw, W):
    """Fold a 3x3 conv weight (OIHW) into 3 banded matmul operands.

    Returns B of shape (3, W*Cin, W*Cout) with
      B[dy, x_in*Cin + ci, x*Cout + co] = w[co, ci, dy, dx]  if x_in == x + dx - 1 (in range)
                                        = 0                  otherwise
    so that  conv_out_row[y] = sum_dy  padded_rows[y + dy] @ B[dy].
    The x-direction zero padding is implicit: out-of-range taps simply never
    appear in the matrix (they would multiply zeros anyway).
    """
    wt = jnp.transpose(w_oihw, (2, 3, 1, 0))  # (dy, dx, ci, co)
    # shift[dx, x_in, x] = 1  iff  x_in == x + dx - 1   (valid positions only)
    shift = jnp.stack(
        [jnp.eye(W, W, k=1 - dx, dtype=w_oihw.dtype) for dx in range(3)])
    B = jnp.einsum('apx,eaic->epixc', shift, wt)  # (dy, x_in, ci, x, co)
    Cout, Cin = w_oihw.shape[0], w_oihw.shape[1]
    return B.reshape(3, W * Cin, W * Cout)


def _unet_block_kernel(xp_ref, b1_ref, v1_ref, b2_ref, v2_ref, o_ref, zp_ref,
                       *, H, W, Cout, leaky_slope):
    # xp_ref: (1, H+2, W*Cin)      row-padded, lane-packed input image
    # b1_ref: (3, W*Cin,  W*Cout)  banded conv1 weights (one matrix per dy)
    # v1_ref: (3, W*Cout)          [bias1 ; bn1_scale ; bn1_shift], lane-packed
    # b2_ref: (3, W*Cout, W*Cout)  banded conv2 weights
    # v2_ref: (3, W*Cout)          [bias2 ; bn2_scale ; bn2_shift]
    # o_ref : (1, H, W*Cout)       lane-dense output
    # zp_ref: (H+2, W*Cout) VMEM scratch: row-halo-padded stage-1 activation
    xp = xp_ref[0]                                          # (H+2, W*Cin)

    # ---- stage 1: conv1 as 3 row-shifted matmuls + bias + LeakyReLU + BN1 ----
    y = jnp.dot(xp[0:H, :], b1_ref[0], preferred_element_type=jnp.float32)
    y = y + jnp.dot(xp[1:H + 1, :], b1_ref[1], preferred_element_type=jnp.float32)
    y = y + jnp.dot(xp[2:H + 2, :], b1_ref[2], preferred_element_type=jnp.float32)
    y = y + v1_ref[0:1, :]                                  # conv1 bias
    y = jnp.where(y >= 0, y, leaky_slope * y)               # LeakyReLU
    y = y * v1_ref[1:2, :] + v1_ref[2:3, :]                 # BatchNorm1 (eval)

    # ---- keep the intermediate on-chip: row-halo pad into VMEM scratch ----
    zp_ref[0:1, :] = jnp.zeros((1, W * Cout), jnp.float32)
    zp_ref[H + 1:H + 2, :] = jnp.zeros((1, W * Cout), jnp.float32)
    zp_ref[1:H + 1, :] = y

    # ---- stage 2: conv2 + bias + LeakyReLU + BN2 ----
    z = jnp.dot(zp_ref[0:H, :], b2_ref[0], preferred_element_type=jnp.float32)
    z = z + jnp.dot(zp_ref[1:H + 1, :], b2_ref[1], preferred_element_type=jnp.float32)
    z = z + jnp.dot(zp_ref[2:H + 2, :], b2_ref[2], preferred_element_type=jnp.float32)
    z = z + v2_ref[0:1, :]                                  # conv2 bias
    z = jnp.where(z >= 0, z, leaky_slope * z)               # LeakyReLU
    z = z * v2_ref[1:2, :] + v2_ref[2:3, :]                 # BatchNorm2 (eval)

    o_ref[0] = z.astype(o_ref.dtype)                        # full (H, W*Cout) store


def unet_conv_block(x_nchw, params, *, leaky_slope):
    """Full UNetConvBlock forward (eval-mode BN, dropout=0). x_nchw: (N, C, H, W)."""
    N, Cin, H, W = x_nchw.shape
    (w1, b1, g1, be1, m1, v1), (w2, b2, g2, be2, m2, v2) = params
    Cout = w1.shape[0]
    eps = 1e-5

    # Wrapper-side layout plumbing: NCHW -> NHWC -> row-padded, lane-packed.
    x_nhwc = jnp.transpose(x_nchw, (0, 2, 3, 1))
    xp = jnp.pad(x_nhwc, ((0, 0), (1, 1), (0, 0), (0, 0))).reshape(N, H + 2, W * Cin)

    # Weight / BN preprocessing (pure parameter reshuffling, no per-pixel work).
    B1 = _conv_band_matrices(w1, W)                     # (3, W*Cin,  W*Cout)
    B2 = _conv_band_matrices(w2, W)                     # (3, W*Cout, W*Cout)
    s1 = g1 / jnp.sqrt(v1 + eps)
    sh1 = be1 - m1 * s1
    s2 = g2 / jnp.sqrt(v2 + eps)
    sh2 = be2 - m2 * s2
    v1p = jnp.stack([jnp.tile(b1, W), jnp.tile(s1, W), jnp.tile(sh1, W)])   # (3, W*Cout)
    v2p = jnp.stack([jnp.tile(b2, W), jnp.tile(s2, W), jnp.tile(sh2, W)])   # (3, W*Cout)

    kernel = functools.partial(
        _unet_block_kernel, H=H, W=W, Cout=Cout, leaky_slope=float(leaky_slope))

    out_packed = pl.pallas_call(
        kernel,
        out_shape=jax.ShapeDtypeStruct((N, H, W * Cout), jnp.float32),
        grid=(N,),
        in_specs=[
            pl.BlockSpec((1, H + 2, W * Cin), lambda n: (n, 0, 0)),
            pl.BlockSpec((3, W * Cin, W * Cout), lambda n: (0, 0, 0)),
            pl.BlockSpec((3, W * Cout), lambda n: (0, 0)),
            pl.BlockSpec((3, W * Cout, W * Cout), lambda n: (0, 0, 0)),
            pl.BlockSpec((3, W * Cout), lambda n: (0, 0)),
        ],
        out_specs=pl.BlockSpec((1, H, W * Cout), lambda n: (n, 0, 0)),
        scratch_shapes=[pltpu.VMEM((H + 2, W * Cout), jnp.float32)],
        compiler_params=pltpu.CompilerParams(dimension_semantics=("parallel",)),
    )(xp, B1, v1p, B2, v2p)

    out = out_packed.reshape(N, H, W, Cout)
    return jnp.transpose(out, (0, 3, 1, 2))             # NHWC -> NCHW


def _reference(x_nchw, params, *, leaky_slope):
    """Pure-JAX reference mirroring the PyTorch module (eval mode)."""
    eps = 1e-5
    x = x_nchw
    for (w_oihw, b, gamma, beta, run_mean, run_var) in params:
        x = jax.lax.conv_general_dilated(
            x, w_oihw, window_strides=(1, 1), padding=((1, 1), (1, 1)),
            dimension_numbers=("NCHW", "OIHW", "NCHW"))
        x = x + b[None, :, None, None]
        x = jnp.where(x >= 0, x, leaky_slope * x)
        x = (x - run_mean[None, :, None, None]) / jnp.sqrt(
            run_var[None, :, None, None] + eps)
        x = x * gamma[None, :, None, None] + beta[None, :, None, None]
    return x


def _init_params(key, in_size, out_size):
    """Deterministic synthetic parameters (shapes match the PyTorch module)."""
    keys = jax.random.split(key, 12)
    params = []
    cin = in_size
    for i in range(2):
        k0, k1, k2, k3, k4, k5 = keys[6 * i:6 * i + 6]
        fan_in = cin * 9
        bound = 1.0 / np.sqrt(fan_in)
        w = jax.random.uniform(k0, (out_size, cin, 3, 3), jnp.float32, -bound, bound)
        b = jax.random.uniform(k1, (out_size,), jnp.float32, -bound, bound)
        gamma = 1.0 + 0.1 * jax.random.normal(k2, (out_size,), jnp.float32)
        beta = 0.1 * jax.random.normal(k3, (out_size,), jnp.float32)
        run_mean = 0.1 * jax.random.normal(k4, (out_size,), jnp.float32)
        run_var = jnp.abs(1.0 + 0.1 * jax.random.normal(k5, (out_size,), jnp.float32))
        params.append((w, b, gamma, beta, run_mean, run_var))
        cin = out_size
    return params


if __name__ == "__main__":
    # TODO(synk): training-mode BatchNorm (batch statistics) and stochastic
    # Dropout are not implemented; this matches PyTorch .eval() with dropout=0.
    key = jax.random.PRNGKey(0)
    k_x, k_p = jax.random.split(key)

    N, Cin, H, W = 2, 4, 16, 16
    Cout = 8
    leaky_slope = 0.1

    x = jax.random.normal(k_x, (N, Cin, H, W), jnp.float32)
    params = _init_params(k_p, Cin, Cout)

    out = unet_conv_block(x, params, leaky_slope=leaky_slope)
    out = jax.block_until_ready(out)

    ref = jax.block_until_ready(_reference(x, params, leaky_slope=leaky_slope))
    np.testing.assert_allclose(np.asarray(out), np.asarray(ref),
                               rtol=1e-4, atol=1e-4)

    assert out.shape == (N, Cout, H, W)
    print("KERNEL_OK")
</pallas_src>

<mosaic_0001>
module attributes {stable_mosaic.version = 11 : i64} {
  func.func @_unet_block_kernel(%arg0: i32, %arg1: memref<1x18x64xf32, #tpu.memory_space<vmem>>, %arg2: memref<3x64x128xf32, #tpu.memory_space<vmem>>, %arg3: memref<3x128xf32, #tpu.memory_space<vmem>>, %arg4: memref<3x128x128xf32, #tpu.memory_space<vmem>>, %arg5: memref<3x128xf32, #tpu.memory_space<vmem>>, %arg6: memref<1x16x128xf32, #tpu.memory_space<vmem>>, %arg7: memref<18x128xf32, #tpu.memory_space<vmem>>) attributes {dimension_semantics = [#tpu.dimension_semantics<parallel>], iteration_bounds = array<i64: 2>, scalar_prefetch = 0 : i64, scratch_operands = 1 : i64, tpu.core_type = #tpu.core_type<tc>, window_params = [{transform_indices = @transform_0, window_bounds = array<i64: 1, 18, 64>}, {pipeline_mode = #tpu.pipeline_mode<synchronous>, transform_indices = @transform_1, window_bounds = array<i64: 3, 64, 128>}, {pipeline_mode = #tpu.pipeline_mode<synchronous>, transform_indices = @transform_2, window_bounds = array<i64: 3, 128>}, {pipeline_mode = #tpu.pipeline_mode<synchronous>, transform_indices = @transform_3, window_bounds = array<i64: 3, 128, 128>}, {pipeline_mode = #tpu.pipeline_mode<synchronous>, transform_indices = @transform_4, window_bounds = array<i64: 3, 128>}, {transform_indices = @transform_5, window_bounds = array<i64: 1, 16, 128>}]} {
    %c0 = arith.constant 0 : index
    %c0_0 = arith.constant 0 : index
    %c0_1 = arith.constant 0 : index
    %0 = vector.load %arg1[%c0, %c0_0, %c0_1] : memref<1x18x64xf32, #tpu.memory_space<vmem>>, vector<1x18x64xf32>
    %1 = vector.shape_cast %0 : vector<1x18x64xf32> to vector<18x64xf32>
    %2 = vector.extract_strided_slice %1 {offsets = [0, 0], sizes = [16, 64], strides = [1, 1]} : vector<18x64xf32> to vector<16x64xf32>
    %c0_2 = arith.constant 0 : index
    %c0_3 = arith.constant 0 : index
    %c0_4 = arith.constant 0 : index
    %3 = vector.load %arg2[%c0_2, %c0_3, %c0_4] : memref<3x64x128xf32, #tpu.memory_space<vmem>>, vector<1x64x128xf32>
    %4 = vector.shape_cast %3 : vector<1x64x128xf32> to vector<64x128xf32>
    %cst = arith.constant dense<0.000000e+00> : vector<16x128xf32>
    %5 = tpu.matmul %2, %4, %cst {dimension_numbers = #tpu.dot_dimension_numbers<[1], [0], [0], [1], [0, 0, 1, 1], [], []>} : vector<16x64xf32>, vector<64x128xf32>, vector<16x128xf32> -> vector<16x128xf32>
    %6 = vector.extract_strided_slice %1 {offsets = [1, 0], sizes = [16, 64], strides = [1, 1]} : vector<18x64xf32> to vector<16x64xf32>
    %c1 = arith.constant 1 : index
    %c0_5 = arith.constant 0 : index
    %c0_6 = arith.constant 0 : index
    %7 = vector.load %arg2[%c1, %c0_5, %c0_6] : memref<3x64x128xf32, #tpu.memory_space<vmem>>, vector<1x64x128xf32>
    %8 = vector.shape_cast %7 : vector<1x64x128xf32> to vector<64x128xf32>
    %cst_7 = arith.constant dense<0.000000e+00> : vector<16x128xf32>
    %9 = tpu.matmul %6, %8, %cst_7 {dimension_numbers = #tpu.dot_dimension_numbers<[1], [0], [0], [1], [0, 0, 1, 1], [], []>} : vector<16x64xf32>, vector<64x128xf32>, vector<16x128xf32> -> vector<16x128xf32>
    %10 = arith.addf %5, %9 : vector<16x128xf32>
    %11 = vector.extract_strided_slice %1 {offsets = [2, 0], sizes = [16, 64], strides = [1, 1]} : vector<18x64xf32> to vector<16x64xf32>
    %c2 = arith.constant 2 : index
    %c0_8 = arith.constant 0 : index
    %c0_9 = arith.constant 0 : index
    %12 = vector.load %arg2[%c2, %c0_8, %c0_9] : memref<3x64x128xf32, #tpu.memory_space<vmem>>, vector<1x64x128xf32>
    %13 = vector.shape_cast %12 : vector<1x64x128xf32> to vector<64x128xf32>
    %cst_10 = arith.constant dense<0.000000e+00> : vector<16x128xf32>
    %14 = tpu.matmul %11, %13, %cst_10 {dimension_numbers = #tpu.dot_dimension_numbers<[1], [0], [0], [1], [0, 0, 1, 1], [], []>} : vector<16x64xf32>, vector<64x128xf32>, vector<16x128xf32> -> vector<16x128xf32>
    %15 = arith.addf %10, %14 : vector<16x128xf32>
    %c0_11 = arith.constant 0 : index
    %c0_12 = arith.constant 0 : index
    %16 = vector.load %arg3[%c0_11, %c0_12] : memref<3x128xf32, #tpu.memory_space<vmem>>, vector<1x128xf32>
    %17 = vector.broadcast %16 : vector<1x128xf32> to vector<16x128xf32>
    %18 = arith.addf %15, %17 : vector<16x128xf32>
    %cst_13 = arith.constant 0.000000e+00 : f32
    %19 = vector.broadcast %cst_13 : f32 to vector<16x128xf32>
    %20 = arith.cmpf oge, %18, %19 : vector<16x128xf32>
    %cst_14 = arith.constant 1.000000e-01 : f32
    %21 = vector.broadcast %cst_14 : f32 to vector<16x128xf32>
    %22 = arith.mulf %21, %18 : vector<16x128xf32>
    %23 = arith.select %20, %18, %22 : vector<16x128xi1>, vector<16x128xf32>
    %c1_15 = arith.constant 1 : index
    %c0_16 = arith.constant 0 : index
    %24 = vector.load %arg3[%c1_15, %c0_16] : memref<3x128xf32, #tpu.memory_space<vmem>>, vector<1x128xf32>
    %25 = vector.broadcast %24 : vector<1x128xf32> to vector<16x128xf32>
    %26 = arith.mulf %23, %25 : vector<16x128xf32>
    %c2_17 = arith.constant 2 : index
    %c0_18 = arith.constant 0 : index
    %27 = vector.load %arg3[%c2_17, %c0_18] : memref<3x128xf32, #tpu.memory_space<vmem>>, vector<1x128xf32>
    %28 = vector.broadcast %27 : vector<1x128xf32> to vector<16x128xf32>
    %29 = arith.addf %26, %28 : vector<16x128xf32>
    %cst_19 = arith.constant 0.000000e+00 : f32
    %30 = vector.broadcast %cst_19 : f32 to vector<1x128xf32>
    %c0_20 = arith.constant 0 : index
    %c0_21 = arith.constant 0 : index
    %31 = vector.load %arg7[%c0_20, %c0_21] : memref<18x128xf32, #tpu.memory_space<vmem>>, vector<1x128xf32>
    tpu.vector_store %arg7[%c0_20, %c0_21], %30 {strides = array<i32>} : memref<18x128xf32, #tpu.memory_space<vmem>>, vector<1x128xf32>,
    %cst_22 = arith.constant 0.000000e+00 : f32
    %32 = vector.broadcast %cst_22 : f32 to vector<1x128xf32>
    %c17 = arith.constant 17 : index
    %c0_23 = arith.constant 0 : index
    %33 = vector.load %arg7[%c17, %c0_23] : memref<18x128xf32, #tpu.memory_space<vmem>>, vector<1x128xf32>
    tpu.vector_store %arg7[%c17, %c0_23], %32 {strides = array<i32>} : memref<18x128xf32, #tpu.memory_space<vmem>>, vector<1x128xf32>,
    %c1_24 = arith.constant 1 : index
    %c0_25 = arith.constant 0 : index
    %34 = vector.load %arg7[%c1_24, %c0_25] : memref<18x128xf32, #tpu.memory_space<vmem>>, vector<16x128xf32>
    tpu.vector_store %arg7[%c1_24, %c0_25], %29 {strides = array<i32>} : memref<18x128xf32, #tpu.memory_space<vmem>>, vector<16x128xf32>,
    %c0_26 = arith.constant 0 : index
    %c0_27 = arith.constant 0 : index
    %35 = vector.load %arg7[%c0_26, %c0_27] : memref<18x128xf32, #tpu.memory_space<vmem>>, vector<16x128xf32>
    %c0_28 = arith.constant 0 : index
    %c0_29 = arith.constant 0 : index
    %c0_30 = arith.constant 0 : index
    %36 = vector.load %arg4[%c0_28, %c0_29, %c0_30] : memref<3x128x128xf32, #tpu.memory_space<vmem>>, vector<1x128x128xf32>
    %37 = vector.shape_cast %36 : vector<1x128x128xf32> to vector<128x128xf32>
    %cst_31 = arith.constant dense<0.000000e+00> : vector<16x128xf32>
    %38 = tpu.matmul %35, %37, %cst_31 {dimension_numbers = #tpu.dot_dimension_numbers<[1], [0], [0], [1], [0, 0, 1, 1], [], []>} : vector<16x128xf32>, vector<128x128xf32>, vector<16x128xf32> -> vector<16x128xf32>
    %c1_32 = arith.constant 1 : index
    %c0_33 = arith.constant 0 : index
    %39 = vector.load %arg7[%c1_32, %c0_33] : memref<18x128xf32, #tpu.memory_space<vmem>>, vector<16x128xf32>
    %c1_34 = arith.constant 1 : index
    %c0_35 = arith.constant 0 : index
    %c0_36 = arith.constant 0 : index
    %40 = vector.load %arg4[%c1_34, %c0_35, %c0_36] : memref<3x128x128xf32, #tpu.memory_space<vmem>>, vector<1x128x128xf32>
    %41 = vector.shape_cast %40 : vector<1x128x128xf32> to vector<128x128xf32>
    %cst_37 = arith.constant dense<0.000000e+00> : vector<16x128xf32>
    %42 = tpu.matmul %39, %41, %cst_37 {dimension_numbers = #tpu.dot_dimension_numbers<[1], [0], [0], [1], [0, 0, 1, 1], [], []>} : vector<16x128xf32>, vector<128x128xf32>, vector<16x128xf32> -> vector<16x128xf32>
    %43 = arith.addf %38, %42 : vector<16x128xf32>
    %c2_38 = arith.constant 2 : index
    %c0_39 = arith.constant 0 : index
    %44 = vector.load %arg7[%c2_38, %c0_39] : memref<18x128xf32, #tpu.memory_space<vmem>>, vector<16x128xf32>
    %c2_40 = arith.constant 2 : index
    %c0_41 = arith.constant 0 : index
    %c0_42 = arith.constant 0 : index
    %45 = vector.load %arg4[%c2_40, %c0_41, %c0_42] : memref<3x128x128xf32, #tpu.memory_space<vmem>>, vector<1x128x128xf32>
    %46 = vector.shape_cast %45 : vector<1x128x128xf32> to vector<128x128xf32>
    %cst_43 = arith.constant dense<0.000000e+00> : vector<16x128xf32>
    %47 = tpu.matmul %44, %46, %cst_43 {dimension_numbers = #tpu.dot_dimension_numbers<[1], [0], [0], [1], [0, 0, 1, 1], [], []>} : vector<16x128xf32>, vector<128x128xf32>, vector<16x128xf32> -> vector<16x128xf32>
    %48 = arith.addf %43, %47 : vector<16x128xf32>
    %c0_44 = arith.constant 0 : index
    %c0_45 = arith.constant 0 : index
    %49 = vector.load %arg5[%c0_44, %c0_45] : memref<3x128xf32, #tpu.memory_space<vmem>>, vector<1x128xf32>
    %50 = vector.broadcast %49 : vector<1x128xf32> to vector<16x128xf32>
    %51 = arith.addf %48, %50 : vector<16x128xf32>
    %cst_46 = arith.constant 0.000000e+00 : f32
    %52 = vector.broadcast %cst_46 : f32 to vector<16x128xf32>
    %53 = arith.cmpf oge, %51, %52 : vector<16x128xf32>
    %cst_47 = arith.constant 1.000000e-01 : f32
    %54 = vector.broadcast %cst_47 : f32 to vector<16x128xf32>
    %55 = arith.mulf %54, %51 : vector<16x128xf32>
    %56 = arith.select %53, %51, %55 : vector<16x128xi1>, vector<16x128xf32>
    %c1_48 = arith.constant 1 : index
    %c0_49 = arith.constant 0 : index
    %57 = vector.load %arg5[%c1_48, %c0_49] : memref<3x128xf32, #tpu.memory_space<vmem>>, vector<1x128xf32>
    %58 = vector.broadcast %57 : vector<1x128xf32> to vector<16x128xf32>
    %59 = arith.mulf %56, %58 : vector<16x128xf32>
    %c2_50 = arith.constant 2 : index
    %c0_51 = arith.constant 0 : index
    %60 = vector.load %arg5[%c2_50, %c0_51] : memref<3x128xf32, #tpu.memory_space<vmem>>, vector<1x128xf32>
    %61 = vector.broadcast %60 : vector<1x128xf32> to vector<16x128xf32>
    %62 = arith.addf %59, %61 : vector<16x128xf32>
    %c0_52 = arith.constant 0 : index
    %c0_53 = arith.constant 0 : index
    %c0_54 = arith.constant 0 : index
    %63 = vector.load %arg6[%c0_52, %c0_53, %c0_54] : memref<1x16x128xf32, #tpu.memory_space<vmem>>, vector<1x16x128xf32>
    %64 = vector.shape_cast %63 : vector<1x16x128xf32> to vector<16x128xf32>
    %65 = vector.shape_cast %62 : vector<16x128xf32> to vector<1x16x128xf32>
    tpu.vector_store %arg6[%c0_52, %c0_53, %c0_54], %65 {strides = array<i32>} : memref<1x16x128xf32, #tpu.memory_space<vmem>>, vector<1x16x128xf32>,
    return
  }
  func.func @transform_0(%arg0: i32) -> (i32, i32, i32) {
    %c0_i32 = arith.constant 0 : i32
    %c0_i32_0 = arith.constant 0 : i32
    %c0_i32_1 = arith.constant 0 : i32
    return %arg0, %c0_i32, %c0_i32_0 : i32, i32, i32
  }
  func.func @transform_1(%arg0: i32) -> (i32, i32, i32) {
    %c0_i32 = arith.constant 0 : i32
    %c0_i32_0 = arith.constant 0 : i32
    %c0_i32_1 = arith.constant 0 : i32
    %c0_i32_2 = arith.constant 0 : i32
    return %c0_i32, %c0_i32_0, %c0_i32_1 : i32, i32, i32
  }
  func.func @transform_2(%arg0: i32) -> (i32, i32) {
    %c0_i32 = arith.constant 0 : i32
    %c0_i32_0 = arith.constant 0 : i32
    %c0_i32_1 = arith.constant 0 : i32
    return %c0_i32, %c0_i32_0 : i32, i32
  }
  func.func @transform_3(%arg0: i32) -> (i32, i32, i32) {
    %c0_i32 = arith.constant 0 : i32
    %c0_i32_0 = arith.constant 0 : i32
    %c0_i32_1 = arith.constant 0 : i32
    %c0_i32_2 = arith.constant 0 : i32
    return %c0_i32, %c0_i32_0, %c0_i32_1 : i32, i32, i32
  }
  func.func @transform_4(%arg0: i32) -> (i32, i32) {
    %c0_i32 = arith.constant 0 : i32
    %c0_i32_0 = arith.constant 0 : i32
    %c0_i32_1 = arith.constant 0 : i32
    return %c0_i32, %c0_i32_0 : i32, i32
  }
  func.func @transform_5(%arg0: i32) -> (i32, i32, i32) {
    %c0_i32 = arith.constant 0 : i32
    %c0_i32_0 = arith.constant 0 : i32
    %c0_i32_1 = arith.constant 0 : i32
    return %arg0, %c0_i32, %c0_i32_0 : i32, i32, i32
  }
}

</mosaic_0001>

<llo_original>
// kernel: tpu_custom_call.1
$region0: #{tpu_custom_call.1}
  #allocation0 [shape = 'u32[]', space=smem, size = 0x4, offset = 0x4, fixed_abs, tag = 'smem constant byte address 0x4 - core index']
  #allocation1 [shape = 'u32[144,128]{1,0:T(1,128)}', space=vmem, size = 0x12000, scoped, tag = 'internal scratch']
  #allocation2 [shape = 'f32[18,128]{1,0:T(8,128)}', space=vmem, size = 0x3000, scoped, tag = 'scratch operand']
  %s0 = inlined_call_operand.vmem [shape: f32[2,18,64], index: 0, kind: input, shape index: {}]
  %s1 = inlined_call_operand.hbm [shape: f32[3,64,128], index: 1, kind: input, shape index: {}]
  %s2 = inlined_call_operand.vmem [shape: f32[3,128], index: 2, kind: input, shape index: {}]
  %s3 = inlined_call_operand.hbm [shape: f32[3,128,128], index: 3, kind: input, shape index: {}]
  %s4 = inlined_call_operand.vmem [shape: f32[3,128], index: 4, kind: input, shape index: {}]
  %s5 = inlined_call_operand.hbm [shape: f32[2,16,128], index: 5, kind: output, shape index: {}]
  %s6 = sld [smem:[#allocation0]]
  $region61: #{tpu_custom_call.1} parent=0
    _
  %s8 = ssub.s32 1, %s6
  %s9 = scalar_select 0, %s8, %s6
  $region1: #{tpu_custom_call.1} parent=0
    #allocation3 [shape = 'u8[98304]{0}', space=vmem, size = 0x18000, scoped, tag = 'input window, operand 1, single buffered']
    #allocation4 [shape = 's32[2]{0}', space=sflag, size = 0x8, scoped, tag = 'scoped memory for tpu_custom_call.1']
    #allocation5 [shape = 's32[2]{0}', space=sflag, size = 0x8, scoped, tag = 'scoped memory for tpu_custom_call.1']
    #allocation6 [shape = 'u8[196608]{0}', space=vmem, size = 0x30000, scoped, tag = 'input window, operand 3, single buffered']
    #allocation7 [shape = 's32[1]{0}', space=sflag, size = 0x4, scoped, tag = 'scoped memory for tpu_custom_call.1']
    #allocation8 [shape = 'u8[16384]{0}', space=vmem, size = 0x4000, scoped, tag = 'output window, operand 0']
    %10 = vsyncpa [#allocation4], 0
    %11 = vsyncpa [#allocation7], 0
    %12 = vsyncpa [#allocation5], 0
    %s13 = scalar_lea.sflag [#allocation5], 1
    %14 = vsyncpa %s13, 0
    loop: start=0, step=1, limit=4
    $region2: #{tpu_custom_call.1} parent=1 // loop_pre_header
      _
    $region3: #{tpu_custom_call.1} parent=1 // loop_header
      %s16 = sphi 0, %s20
      %p17 = scmp.ge.s32.totalorder %s16, 4
      %s26 = sphi 0, %s28
      %s29 = sphi 0, %s26
      %s30 = sphi 0, %s29
      %s46 = sphi 0, %s30
      %s50 = sphi 0, %s50
      %s52 = sphi 0, %s50
      %s53 = sphi 0, %s52
      %s67 = sphi 0, %s53
      %s71 = sphi 0, %s71
      %s73 = sphi 0, %s71
      %s74 = sphi 0, %s73
      %s88 = sphi 0, %s74
      %s92 = sphi 0, %s92
      %s94 = sphi 0, %s92
      %s95 = sphi 0, %s94
      %s109 = sphi 0, %s95
      %s113 = sphi 0, %s113
      %s115 = sphi 0, %s113
      %s116 = sphi 0, %s115
      %s130 = sphi 0, %s116
      %s136 = sphi 0, %s138
      %s139 = sphi 0, %s136
      %s140 = sphi 0, %s139
      %s156 = sphi 0, %s140
    $region4: #{tpu_custom_call.1} parent=1 // loop_header_branch
      %19 = sbr.rel (%p17) target = $region8
    $region5: #{tpu_custom_call.1} parent=1 // loop_body
      %s21 = ssub.s32 %s16, 1
      %s22 = ssub.s32 %s16, 2
      %s23 = sadd.s32 %s16, 1
      %s24 = ssub.s32 %s16, %s23
      %p25 = scmp.eq.s32.totalorder %s24, 0
      %s27 = sadd.s32 %s26, 1
      %s28 = scalar_select %p25, %s26, %s27
      %p31 = pneg %p25
      %p32 = scmp.eq.s32.totalorder %s16, 1
      %p33 = por %p31, %p32
      %p34 = scmp.ne.s32.totalorder %s26, %s29
      %p35 = scmp.eq.s32.totalorder %s16, 0
      %p36 = por %p34, %p35
      %p37 = scmp.ne.s32.totalorder %s26, %s29
      %p38 = scmp.eq.s32.totalorder %s21, 1
      %p39 = por %p37, %p38
      %p40 = scmp.ne.s32.totalorder %s29, %s30
      %p41 = scmp.eq.s32.totalorder %s21, 0
      %p42 = por %p40, %p41
      %p43 = scmp.ne.s32.totalorder %s29, %s30
      %p44 = scmp.eq.s32.totalorder %s22, 1
      %p45 = por %p43, %p44
      %p47 = scmp.ne.s32.totalorder %s30, %s46
      %p48 = scmp.eq.s32.totalorder %s22, 0
      %p49 = por %p47, %p48
      %s51 = sadd.s32 %s50, 1
      %p54 = scmp.eq.s32.totalorder %s16, 1
      %p55 = scmp.ne.s32.totalorder %s50, %s52
      %p56 = scmp.eq.s32.totalorder %s16, 0
      %p57 = por %p55, %p56
      %p58 = scmp.ne.s32.totalorder %s50, %s52
      %p59 = scmp.eq.s32.totalorder %s21, 1
      %p60 = por %p58, %p59
      %p61 = scmp.ne.s32.totalorder %s52, %s53
      %p62 = scmp.eq.s32.totalorder %s21, 0
      %p63 = por %p61, %p62
      %p64 = scmp.ne.s32.totalorder %s52, %s53
      %p65 = scmp.eq.s32.totalorder %s22, 1
      %p66 = por %p64, %p65
      %p68 = scmp.ne.s32.totalorder %s53, %s67
      %p69 = scmp.eq.s32.totalorder %s22, 0
      %p70 = por %p68, %p69
      %s72 = sadd.s32 %s71, 1
      %p75 = scmp.eq.s32.totalorder %s16, 1
      %p76 = scmp.ne.s32.totalorder %s71, %s73
      %p77 = scmp.eq.s32.totalorder %s16, 0
      %p78 = por %p76, %p77
      %p79 = scmp.ne.s32.totalorder %s71, %s73
      %p80 = scmp.eq.s32.totalorder %s21, 1
      %p81 = por %p79, %p80
      %p82 = scmp.ne.s32.totalorder %s73, %s74
      %p83 = scmp.eq.s32.totalorder %s21, 0
      %p84 = por %p82, %p83
      %p85 = scmp.ne.s32.totalorder %s73, %s74
      %p86 = scmp.eq.s32.totalorder %s22, 1
      %p87 = por %p85, %p86
      %p89 = scmp.ne.s32.totalorder %s74, %s88
      %p90 = scmp.eq.s32.totalorder %s22, 0
      %p91 = por %p89, %p90
      %s93 = sadd.s32 %s92, 1
      %p96 = scmp.eq.s32.totalorder %s16, 1
      %p97 = scmp.ne.s32.totalorder %s92, %s94
      %p98 = scmp.eq.s32.totalorder %s16, 0
      %p99 = por %p97, %p98
      %p100 = scmp.ne.s32.totalorder %s92, %s94
      %p101 = scmp.eq.s32.totalorder %s21, 1
      %p102 = por %p100, %p101
      %p103 = scmp.ne.s32.totalorder %s94, %s95
      %p104 = scmp.eq.s32.totalorder %s21, 0
      %p105 = por %p103, %p104
      %p106 = scmp.ne.s32.totalorder %s94, %s95
      %p107 = scmp.eq.s32.totalorder %s22, 1
      %p108 = por %p106, %p107
      %p110 = scmp.ne.s32.totalorder %s95, %s109
      %p111 = scmp.eq.s32.totalorder %s22, 0
      %p112 = por %p110, %p111
      %s114 = sadd.s32 %s113, 1
      %p117 = scmp.eq.s32.totalorder %s16, 1
      %p118 = scmp.ne.s32.totalorder %s113, %s115
      %p119 = scmp.eq.s32.totalorder %s16, 0
      %p120 = por %p118, %p119
      %p121 = scmp.ne.s32.totalorder %s113, %s115
      %p122 = scmp.eq.s32.totalorder %s21, 1
      %p123 = por %p121, %p122
      %p124 = scmp.ne.s32.totalorder %s115, %s116
      %p125 = scmp.eq.s32.totalorder %s21, 0
      %p126 = por %p124, %p125
      %p127 = scmp.ne.s32.totalorder %s115, %s116
      %p128 = scmp.eq.s32.totalorder %s22, 1
      %p129 = por %p127, %p128
      %p131 = scmp.ne.s32.totalorder %s116, %s130
      %p132 = scmp.eq.s32.totalorder %s22, 0
      %p133 = por %p131, %p132
      %s134 = ssub.s32 %s16, %s23
      %p135 = scmp.eq.s32.totalorder %s134, 0
      %s137 = sadd.s32 %s136, 1
      %s138 = scalar_select %p135, %s136, %s137
      %p141 = pneg %p135
      %p142 = scmp.eq.s32.totalorder %s16, 1
      %p143 = por %p141, %p142
      %p144 = scmp.ne.s32.totalorder %s136, %s139
      %p145 = scmp.eq.s32.totalorder %s16, 0
      %p146 = por %p144, %p145
      %p147 = scmp.ne.s32.totalorder %s136, %s139
      %p148 = scmp.eq.s32.totalorder %s21, 1
      %p149 = por %p147, %p148
      %p150 = scmp.ne.s32.totalorder %s139, %s140
      %p151 = scmp.eq.s32.totalorder %s21, 0
      %p152 = por %p150, %p151
      %p153 = scmp.ne.s32.totalorder %s139, %s140
      %p154 = scmp.eq.s32.totalorder %s22, 1
      %p155 = por %p153, %p154
      %p157 = scmp.ne.s32.totalorder %s140, %s156
      %p158 = scmp.eq.s32.totalorder %s22, 0
      %p159 = por %p157, %p158
      %p160 = scmp.le.s32.totalorder 1, %s16
      %p161 = scmp.lt.s32.totalorder %s16, 3
      %p162 = pnand %p160, %p161
      %p163 = pneg %p162
      // Predicated region
      $region9: #{tpu_custom_call.1} parent=5 // pred_check
        _
      $region10: #{tpu_custom_call.1} parent=5 // pred_check_branch
        %165 = sbr.rel (%p162) target = $region12
      $region11: #{tpu_custom_call.1} parent=5 // pred_region
        %s166 = ssub.s32 %s16, 1
        // Predicated region
        $region13: #{tpu_custom_call.1} parent=11 // pred_check
          %p167 = pneg %p63
        $region14: #{tpu_custom_call.1} parent=11 // pred_check_branch
          %169 = sbr.rel (%p167) target = $region16
        $region15: #{tpu_custom_call.1} parent=11 // pred_region
          %s171 = ssub.s32 3072, 3072
          %172 = vsyncadd [#allocation4], %s171
          %s173 = sshll.u32 [#allocation3], 4
          %s174 = int_to_ptr.vmem [resolvable:$true] %s173
          %179 = dma.hbm_to_vmem [thread:$0]  %s1, 3072, %s174, [#allocation4], 128, 128, 8
        $region16: #{tpu_custom_call.1} parent=11 // pred_fallthru
          _
        // Predicated region
        $region17: #{tpu_custom_call.1} parent=11 // pred_check
          %p180 = pneg %p84
        $region18: #{tpu_custom_call.1} parent=11 // pred_check_branch
          %182 = sbr.rel (%p180) target = $region20
        $region19: #{tpu_custom_call.1} parent=11 // pred_region
          _
        $region20: #{tpu_custom_call.1} parent=11 // pred_fallthru
          _
        // Predicated region
        $region21: #{tpu_custom_call.1} parent=11 // pred_check
          %p183 = pneg %p105
        $region22: #{tpu_custom_call.1} parent=11 // pred_check_branch
          %185 = sbr.rel (%p183) target = $region24
        $region23: #{tpu_custom_call.1} parent=11 // pred_region
          %s187 = ssub.s32 6144, 6144
          %188 = vsyncadd [#allocation7], %s187
          %s189 = sshll.u32 [#allocation6], 4
          %s190 = int_to_ptr.vmem [resolvable:$true] %s189
          %195 = dma.hbm_to_vmem [thread:$0]  %s3, 6144, %s190, [#allocation7], 128, 128, 8
        $region24: #{tpu_custom_call.1} parent=11 // pred_fallthru
          _
        // Predicated region
        $region25: #{tpu_custom_call.1} parent=11 // pred_check
          %p196 = pneg %p126
        $region26: #{tpu_custom_call.1} parent=11 // pred_check_branch
          %198 = sbr.rel (%p196) target = $region28
        $region27: #{tpu_custom_call.1} parent=11 // pred_region
          _
        $region28: #{tpu_custom_call.1} parent=11 // pred_fallthru
          _
      $region12: #{tpu_custom_call.1} parent=5 // pred_fallthru
        _
      %p199 = scmp.lt.s32.totalorder %s16, 2
      // Predicated region
      $region29: #{tpu_custom_call.1} parent=5 // pred_check
        %p200 = pneg %p199
      $region30: #{tpu_custom_call.1} parent=5 // pred_check_branch
        %202 = sbr.rel (%p200) target = $region32
      $region31: #{tpu_custom_call.1} parent=5 // pred_region
        // Predicated region
        $region33: #{tpu_custom_call.1} parent=31 // pred_check
          %p203 = pneg %p36
        $region34: #{tpu_custom_call.1} parent=31 // pred_check_branch
          %205 = sbr.rel (%p203) target = $region36
        $region35: #{tpu_custom_call.1} parent=31 // pred_region
          %p206 = scmp.lt.s32.totalorder %s16, 1
          %s207 = scalar_select %p206, %s16, 1
          %s208 = smul.addr %s207, 3
          %s209 = smul.addr %s208, 8
          %s210 = scalar_lea.vmem %s0, %s209
        $region36: #{tpu_custom_call.1} parent=31 // pred_fallthru
          _
      $region32: #{tpu_custom_call.1} parent=5 // pred_fallthru
        _
      %p211 = scmp.le.s32.totalorder 1, %s16
      %p212 = scmp.lt.s32.totalorder %s16, 3
      %p213 = pnand %p211, %p212
      %p214 = pneg %p213
      // Predicated region
      $region37: #{tpu_custom_call.1} parent=5 // pred_check
        _
      $region38: #{tpu_custom_call.1} parent=5 // pred_check_branch
        %216 = sbr.rel (%p213) target = $region40
      $region39: #{tpu_custom_call.1} parent=5 // pred_region
        %s217 = ssub.s32 %s16, 1
        // Predicated region
        $region41: #{tpu_custom_call.1} parent=39 // pred_check
          %p218 = pneg %p63
        $region42: #{tpu_custom_call.1} parent=39 // pred_check_branch
          %220 = sbr.rel (%p218) target = $region44
        $region43: #{tpu_custom_call.1} parent=39 // pred_region
          %221 = dma.done [#allocation4], 3072
        $region44: #{tpu_custom_call.1} parent=39 // pred_fallthru
          _
        // Predicated region
        $region45: #{tpu_custom_call.1} parent=39 // pred_check
          %p222 = pneg %p105
        $region46: #{tpu_custom_call.1} parent=39 // pred_check_branch
          %224 = sbr.rel (%p222) target = $region48
        $region47: #{tpu_custom_call.1} parent=39 // pred_region
          %225 = dma.done [#allocation7], 6144
        $region48: #{tpu_custom_call.1} parent=39 // pred_fallthru
          _
        %p226 = scmp.lt.s32.totalorder %s21, 1
        %s227 = scalar_select %p226, %s21, 1
        %s228 = smul.addr %s227, 3
        %s229 = smul.addr %s228, 8
        %s230 = scalar_lea.vmem %s0, %s229
        %p231 = pneg %p42
        %p232 = pneg %p39
        %p233 = pneg %p63
        %p234 = pneg %p60
        %p235 = pneg %p84
        %p236 = pneg %p81
        %p237 = pneg %p105
        %p238 = pneg %p102
        %p239 = pneg %p126
        %p240 = pneg %p123
        %p241 = pneg %p152
        %p242 = pneg %p149
        %s243 = sand.u32 %s139, 1
        %s244 = scalar_lea.sflag [#allocation5], %s243
        %s245 = sand.u32 %s139, 1
        %s246 = smul.addr %s245, 16
        %s247 = scalar_lea.vmem [#allocation8], %s246
        %p248 = scmp.lt.s32.totalorder %s21, 1
        %s249 = scalar_select %p248, %s21, 1
        %s250 = smul.addr %s249, 3
        %s251 = smul.addr %s250, 8
        %s252 = scalar_lea.vmem %s0, %s251
        %v253 = vld [vmem:[%s252] sm:$0xff]
        %v254 = vld [vmem:[%s252 + $0x8] sm:$0xff]
        %v255 = vld [vmem:[%s252 + $0x10] sm:$0x3]
        %v256 = vld [vmem:[#allocation3] sm:$0xff]
        %v257 = vld [vmem:[#allocation3 + $0x8] sm:$0xff]
        %v258 = vld [vmem:[#allocation3 + $0x10] sm:$0xff]
        %v259 = vld [vmem:[#allocation3 + $0x18] sm:$0xff]
        %v260 = vld [vmem:[#allocation3 + $0x20] sm:$0xff]
        %v261 = vld [vmem:[#allocation3 + $0x28] sm:$0xff]
        %v262 = vld [vmem:[#allocation3 + $0x30] sm:$0xff]
        %v263 = vld [vmem:[#allocation3 + $0x38] sm:$0xff]
        %s264 = scalar_lea.vmem [#allocation3], 64
        %v265 = vld [vmem:[%s264] sm:$0xff]
        %v266 = vld [vmem:[%s264 + $0x8] sm:$0xff]
        %v267 = vld [vmem:[%s264 + $0x10] sm:$0xff]
        %v268 = vld [vmem:[%s264 + $0x18] sm:$0xff]
        %v269 = vld [vmem:[%s264 + $0x20] sm:$0xff]
        %v270 = vld [vmem:[%s264 + $0x28] sm:$0xff]
        %v271 = vld [vmem:[%s264 + $0x30] sm:$0xff]
        %v272 = vld [vmem:[%s264 + $0x38] sm:$0xff]
        %vm276 = vcmask 1046528
        %v277 = vrot.slane %v253, 1
        %v278 = vrot.slane %v254, 1
        %v279 = vsel %vm276, %v277, %v278
        %v280 = vrot.slane %v255, 1
        %v281 = vsel %vm276, %v278, %v280
        %vm282 = vcmask 523264
        %v283 = vsel %vm282, %v279, 0
        %v285 = vsel %vm282, %v281, 0
        %287 = vmatprep.subr.mxu0 0.0
        %288 = vmatpush1.msra.mxu0 %v265
        %289 = vmatprep.subr.mxu0 0.0
        %290 = vmatpush1.msra.mxu0 %v266
        %291 = vmatprep.subr.mxu0 0.0
        %292 = vmatpush1.msra.mxu0 %v267
        %293 = vmatprep.subr.mxu0 0.0
        %294 = vmatpush1.msra.mxu0 %v268
        %295 = vmatprep.subr.mxu0 0.0
        %296 = vmatpush1.msra.mxu0 %v269
        %297 = vmatprep.subr.mxu0 0.0
        %298 = vmatpush1.msra.mxu0 %v270
        %299 = vmatprep.subr.mxu0 0.0
        %300 = vmatpush1.msra.mxu0 %v271
        %301 = vmatprep.subr.mxu0 0.0
        %302 = vmatpush1.msra.mxu0 %v272
        %303 = vmatprep.subr.mxu0 0.0
        %304 = vmatpush1.msra.mxu0 0.0
        %305 = vmatprep.subr.mxu0 0.0
        %306 = vmatpush1.msra.mxu0 0.0
        %307 = vmatprep.subr.mxu0 0.0
        %308 = vmatpush1.msra.mxu0 0.0
        %309 = vmatprep.subr.mxu0 0.0
        %310 = vmatpush1.msra.mxu0 0.0
        %311 = vmatprep.subr.mxu0 0.0
        %312 = vmatpush1.msra.mxu0 0.0
        %313 = vmatprep.subr.mxu0 0.0
        %314 = vmatpush1.msra.mxu0 0.0
        %315 = vmatprep.subr.mxu0 0.0
        %316 = vmatpush1.msra.mxu0 0.0
        %317 = vmatprep.subr.mxu0 0.0
        %318 = vmatpush1.msra.mxu0 0.0
        %319 = vmatprep.subr.mxu0 0.0
        %320 = vmatpush1.msra.mxu0 0.0
        %321 = vmatprep.subr.mxu0 0.0
        %322 = vmatpush1.msra.mxu0 0.0
        %323 = vmatprep.subr.mxu0 0.0
        %324 = vmatpush1.msra.mxu0 0.0
        %325 = vmatprep.subr.mxu0 0.0
        %326 = vmatpush1.msra.mxu0 0.0
        %327 = vmatprep.subr.mxu0 0.0
        %328 = vmatpush1.msra.mxu0 0.0
        %329 = vmatprep.subr.mxu0 0.0
        %330 = vmatpush1.msra.mxu0 0.0
        %331 = vmatprep.subr.mxu0 0.0
        %332 = vmatpush1.msra.mxu0 0.0
        %333 = vmatprep.subr.mxu0 0.0
        %334 = vmatpush1.msra.mxu0 0.0
        %335 = vmatprep.subr.mxu0 0.0
        %336 = vmatpush1.msra.mxu0 0.0
        %337 = vmatprep.subr.mxu0 0.0
        %338 = vmatpush1.msra.mxu0 0.0
        %339 = vmatprep.subr.mxu0 0.0
        %340 = vmatpush1.msra.mxu0 0.0
        %341 = vmatprep.subr.mxu0 0.0
        %342 = vmatpush1.msra.mxu0 0.0
        %343 = vmatprep.subr.mxu0 0.0
        %344 = vmatpush1.msra.mxu0 0.0
        %345 = vmatprep.subr.mxu0 0.0
        %346 = vmatpush1.msra.mxu0 0.0
        %347 = vmatprep.subr.mxu0 0.0
        %348 = vmatpush1.msra.mxu0 0.0
        %349 = vmatprep.subr.mxu0 0.0
        %350 = vmatpush1.msra.mxu0 0.0
        %351 = vmatprep.mubr.f32.mxu0 0.0
        %352 = vmatmul.mubr.f32.gmra.mrb[0].mxu0 %v283
        %v353 = vpop.f32.mrb[0].mxu0
        %v354 = vadd.f32 0.0, %v353
        %v355 = vpop.f32.mrb[0].mxu0
        %356 = vmatprep.mubr.f32.mxu0 0.0
        %357 = vmatmul.mubr.f32.gmra.mrb[0].mxu0 %v285
        %v358 = vpop.f32.mrb[0].mxu0
        %v359 = vadd.f32 0.0, %v358
        %v360 = vpop.f32.mrb[0].mxu0
        %361 = vdwg.mxu0
        %v362 = vsel %vm282, %v253, 0
        %v364 = vsel %vm282, %v254, 0
        %366 = vmatprep.subr.mxu0 0.0
        %367 = vmatpush1.msra.mxu0 %v256
        %368 = vmatprep.subr.mxu0 0.0
        %369 = vmatpush1.msra.mxu0 %v257
        %370 = vmatprep.subr.mxu0 0.0
        %371 = vmatpush1.msra.mxu0 %v258
        %372 = vmatprep.subr.mxu0 0.0
        %373 = vmatpush1.msra.mxu0 %v259
        %374 = vmatprep.subr.mxu0 0.0
        %375 = vmatpush1.msra.mxu0 %v260
        %376 = vmatprep.subr.mxu0 0.0
        %377 = vmatpush1.msra.mxu0 %v261
        %378 = vmatprep.subr.mxu0 0.0
        %379 = vmatpush1.msra.mxu0 %v262
        %380 = vmatprep.subr.mxu0 0.0
        %381 = vmatpush1.msra.mxu0 %v263
        %382 = vmatprep.subr.mxu0 0.0
        %383 = vmatpush1.msra.mxu0 0.0
        %384 = vmatprep.subr.mxu0 0.0
        %385 = vmatpush1.msra.mxu0 0.0
        %386 = vmatprep.subr.mxu0 0.0
        %387 = vmatpush1.msra.mxu0 0.0
        %388 = vmatprep.subr.mxu0 0.0
        %389 = vmatpush1.msra.mxu0 0.0
        %390 = vmatprep.subr.mxu0 0.0
        %391 = vmatpush1.msra.mxu0 0.0
        %392 = vmatprep.subr.mxu0 0.0
        %393 = vmatpush1.msra.mxu0 0.0
        %394 = vmatprep.subr.mxu0 0.0
        %395 = vmatpush1.msra.mxu0 0.0
        %396 = vmatprep.subr.mxu0 0.0
        %397 = vmatpush1.msra.mxu0 0.0
        %398 = vmatprep.subr.mxu0 0.0
        %399 = vmatpush1.msra.mxu0 0.0
        %400 = vmatprep.subr.mxu0 0.0
        %401 = vmatpush1.msra.mxu0 0.0
        %402 = vmatprep.subr.mxu0 0.0
        %403 = vmatpush1.msra.mxu0 0.0
        %404 = vmatprep.subr.mxu0 0.0
        %405 = vmatpush1.msra.mxu0 0.0
        %406 = vmatprep.subr.mxu0 0.0
        %407 = vmatpush1.msra.mxu0 0.0
        %408 = vmatprep.subr.mxu0 0.0
        %409 = vmatpush1.msra.mxu0 0.0
        %410 = vmatprep.subr.mxu0 0.0
        %411 = vmatpush1.msra.mxu0 0.0
        %412 = vmatprep.subr.mxu0 0.0
        %413 = vmatpush1.msra.mxu0 0.0
        %414 = vmatprep.subr.mxu0 0.0
        %415 = vmatpush1.msra.mxu0 0.0
        %416 = vmatprep.subr.mxu0 0.0
        %417 = vmatpush1.msra.mxu0 0.0
        %418 = vmatprep.subr.mxu0 0.0
        %419 = vmatpush1.msra.mxu0 0.0
        %420 = vmatprep.subr.mxu0 0.0
        %421 = vmatpush1.msra.mxu0 0.0
        %422 = vmatprep.subr.mxu0 0.0
        %423 = vmatpush1.msra.mxu0 0.0
        %424 = vmatprep.subr.mxu0 0.0
        %425 = vmatpush1.msra.mxu0 0.0
        %426 = vmatprep.subr.mxu0 0.0
        %427 = vmatpush1.msra.mxu0 0.0
        %428 = vmatprep.subr.mxu0 0.0
        %429 = vmatpush1.msra.mxu0 0.0
        %430 = vmatprep.mubr.f32.mxu0 0.0
        %431 = vmatmul.mubr.f32.gmra.mrb[0].mxu0 %v362
        %v432 = vpop.f32.mrb[0].mxu0
        %v433 = vadd.f32 %v354, %v432
        %v434 = vpop.f32.mrb[0].mxu0
        %435 = vmatprep.mubr.f32.mxu0 0.0
        %436 = vmatmul.mubr.f32.gmra.mrb[0].mxu0 %v364
        %v437 = vpop.f32.mrb[0].mxu0
        %v438 = vadd.f32 %v359, %v437
        %v439 = vpop.f32.mrb[0].mxu0
        %440 = vdwg.mxu0
        %s441 = scalar_lea.vmem [#allocation3], 128
        %v442 = vld [vmem:[%s441] sm:$0xff]
        %v443 = vld [vmem:[%s441 + $0x8] sm:$0xff]
        %v444 = vld [vmem:[%s441 + $0x10] sm:$0xff]
        %v445 = vld [vmem:[%s441 + $0x18] sm:$0xff]
        %v446 = vld [vmem:[%s441 + $0x20] sm:$0xff]
        %v447 = vld [vmem:[%s441 + $0x28] sm:$0xff]
        %v448 = vld [vmem:[%s441 + $0x30] sm:$0xff]
        %v449 = vld [vmem:[%s441 + $0x38] sm:$0xff]
        %vm450 = vcmask 1045504
        %v451 = vrot.slane %v253, 2
        %v452 = vrot.slane %v254, 2
        %v453 = vsel %vm450, %v451, %v452
        %v454 = vrot.slane %v255, 2
        %v455 = vsel %vm450, %v452, %v454
        %v456 = vsel %vm282, %v453, 0
        %v458 = vsel %vm282, %v455, 0
        %460 = vmatprep.subr.mxu0 0.0
        %461 = vmatpush1.msra.mxu0 %v442
        %462 = vmatprep.subr.mxu0 0.0
        %463 = vmatpush1.msra.mxu0 %v443
        %464 = vmatprep.subr.mxu0 0.0
        %465 = vmatpush1.msra.mxu0 %v444
        %466 = vmatprep.subr.mxu0 0.0
        %467 = vmatpush1.msra.mxu0 %v445
        %468 = vmatprep.subr.mxu0 0.0
        %469 = vmatpush1.msra.mxu0 %v446
        %470 = vmatprep.subr.mxu0 0.0
        %471 = vmatpush1.msra.mxu0 %v447
        %472 = vmatprep.subr.mxu0 0.0
        %473 = vmatpush1.msra.mxu0 %v448
        %474 = vmatprep.subr.mxu0 0.0
        %475 = vmatpush1.msra.mxu0 %v449
        %476 = vmatprep.subr.mxu0 0.0
        %477 = vmatpush1.msra.mxu0 0.0
        %478 = vmatprep.subr.mxu0 0.0
        %479 = vmatpush1.msra.mxu0 0.0
        %480 = vmatprep.subr.mxu0 0.0
        %481 = vmatpush1.msra.mxu0 0.0
        %482 = vmatprep.subr.mxu0 0.0
        %483 = vmatpush1.msra.mxu0 0.0
        %484 = vmatprep.subr.mxu0 0.0
        %485 = vmatpush1.msra.mxu0 0.0
        %486 = vmatprep.subr.mxu0 0.0
        %487 = vmatpush1.msra.mxu0 0.0
        %488 = vmatprep.subr.mxu0 0.0
        %489 = vmatpush1.msra.mxu0 0.0
        %490 = vmatprep.subr.mxu0 0.0
        %491 = vmatpush1.msra.mxu0 0.0
        %492 = vmatprep.subr.mxu0 0.0
        %493 = vmatpush1.msra.mxu0 0.0
        %494 = vmatprep.subr.mxu0 0.0
        %495 = vmatpush1.msra.mxu0 0.0
        %496 = vmatprep.subr.mxu0 0.0
        %497 = vmatpush1.msra.mxu0 0.0
        %498 = vmatprep.subr.mxu0 0.0
        %499 = vmatpush1.msra.mxu0 0.0
        %500 = vmatprep.subr.mxu0 0.0
        %501 = vmatpush1.msra.mxu0 0.0
        %502 = vmatprep.subr.mxu0 0.0
        %503 = vmatpush1.msra.mxu0 0.0
        %504 = vmatprep.subr.mxu0 0.0
        %505 = vmatpush1.msra.mxu0 0.0
        %506 = vmatprep.subr.mxu0 0.0
        %507 = vmatpush1.msra.mxu0 0.0
        %508 = vmatprep.subr.mxu0 0.0
        %509 = vmatpush1.msra.mxu0 0.0
        %510 = vmatprep.subr.mxu0 0.0
        %511 = vmatpush1.msra.mxu0 0.0
        %512 = vmatprep.subr.mxu0 0.0
        %513 = vmatpush1.msra.mxu0 0.0
        %514 = vmatprep.subr.mxu0 0.0
        %515 = vmatpush1.msra.mxu0 0.0
        %516 = vmatprep.subr.mxu0 0.0
        %517 = vmatpush1.msra.mxu0 0.0
        %518 = vmatprep.subr.mxu0 0.0
        %519 = vmatpush1.msra.mxu0 0.0
        %520 = vmatprep.subr.mxu0 0.0
        %521 = vmatpush1.msra.mxu0 0.0
        %522 = vmatprep.subr.mxu0 0.0
        %523 = vmatpush1.msra.mxu0 0.0
        %524 = vmatprep.mubr.f32.mxu0 0.0
        %525 = vmatmul.mubr.f32.gmra.mrb[0].mxu0 %v456
        %v526 = vpop.f32.mrb[0].mxu0
        %v527 = vadd.f32 0.0, %v526
        %v528 = vpop.f32.mrb[0].mxu0
        %529 = vmatprep.mubr.f32.mxu0 0.0
        %530 = vmatmul.mubr.f32.gmra.mrb[0].mxu0 %v458
        %v531 = vpop.f32.mrb[0].mxu0
        %v532 = vadd.f32 0.0, %v531
        %v533 = vpop.f32.mrb[0].mxu0
        %534 = vdwg.mxu0
        %v535 = vadd.f32 %v433, %v527
        %v536 = vadd.f32 %v438, %v532
        %v537 = vld [vmem:[%s2] sm:$0x1]
        %v538 = vlaneseq
        %v539 = vshrl.u32 %v538, 7
        %v540 = vsub.s32 0, %v539
        %v541 = vrot.slane %v537, %v540
        %v542 = vadd.f32 %v535, %v541
        %v543 = vadd.f32 %v536, %v541
        %vm544 = vcmp.ge.f32.partialorder %v542, 0.0
        %vm545 = vcmp.ge.f32.partialorder %v543, 0.0
        %v546 = vmul.f32 %v542, 0.1
        %v547 = vmul.f32 %v543, 0.1
        %v548 = vsel %vm544, %v542, %v546
        %v549 = vsel %vm545, %v543, %v547
        %v550 = vld [vmem:[%s2 + $0x1] sm:$0x1]
        %v551 = vlaneseq
        %v552 = vshrl.u32 %v551, 7
        %v553 = vsub.s32 0, %v552
        %v554 = vrot.slane %v550, %v553
        %v555 = vmul.f32 %v548, %v554
        %v556 = vmul.f32 %v549, %v554
        %v557 = vld [vmem:[%s2 + $0x2] sm:$0x1]
        %v558 = vlaneseq
        %v559 = vshrl.u32 %v558, 7
        %v560 = vsub.s32 0, %v559
        %v561 = vrot.slane %v557, %v560
        %v562 = vadd.f32 %v555, %v561
        %v563 = vadd.f32 %v556, %v561
        %564 = vst [vmem:[#allocation2] sm:$0x1] 0.0
        %565 = vst [vmem:[#allocation2 + $0x11] sm:$0x1] 0.0
        %566 = vst [vmem:[#allocation2 + $0x1] sm:$0xff] %v562
        %567 = vst [vmem:[#allocation2 + $0x9] sm:$0xff] %v563
        %v568 = vld [vmem:[#allocation2] sm:$0xff]
        %v569 = vld [vmem:[#allocation2 + $0x8] sm:$0xff]
        %v570 = vld [vmem:[#allocation6] sm:$0xff]
        %v571 = vld [vmem:[#allocation6 + $0x8] sm:$0xff]
        %v572 = vld [vmem:[#allocation6 + $0x10] sm:$0xff]
        %v573 = vld [vmem:[#allocation6 + $0x18] sm:$0xff]
        %v574 = vld [vmem:[#allocation6 + $0x20] sm:$0xff]
        %v575 = vld [vmem:[#allocation6 + $0x28] sm:$0xff]
        %v576 = vld [vmem:[#allocation6 + $0x30] sm:$0xff]
        %v577 = vld [vmem:[#allocation6 + $0x38] sm:$0xff]
        %v578 = vld [vmem:[#allocation6 + $0x40] sm:$0xff]
        %v579 = vld [vmem:[#allocation6 + $0x48] sm:$0xff]
        %v580 = vld [vmem:[#allocation6 + $0x50] sm:$0xff]
        %v581 = vld [vmem:[#allocation6 + $0x58] sm:$0xff]
        %v582 = vld [vmem:[#allocation6 + $0x60] sm:$0xff]
        %v583 = vld [vmem:[#allocation6 + $0x68] sm:$0xff]
        %v584 = vld [vmem:[#allocation6 + $0x70] sm:$0xff]
        %v585 = vld [vmem:[#allocation6 + $0x78] sm:$0xff]
        %v586 = vld [vmem:[#allocation2 + $0x1] sm:$0xff]
        %v587 = vld [vmem:[#allocation2 + $0x9] sm:$0xff]
        %s588 = scalar_lea.vmem [#allocation6], 128
        %v589 = vld [vmem:[%s588] sm:$0xff]
        %v590 = vld [vmem:[%s588 + $0x8] sm:$0xff]
        %v591 = vld [vmem:[%s588 + $0x10] sm:$0xff]
        %v592 = vld [vmem:[%s588 + $0x18] sm:$0xff]
        %v593 = vld [vmem:[%s588 + $0x20] sm:$0xff]
        %v594 = vld [vmem:[%s588 + $0x28] sm:$0xff]
        %v595 = vld [vmem:[%s588 + $0x30] sm:$0xff]
        %v596 = vld [vmem:[%s588 + $0x38] sm:$0xff]
        %v597 = vld [vmem:[%s588 + $0x40] sm:$0xff]
        %v598 = vld [vmem:[%s588 + $0x48] sm:$0xff]
        %v599 = vld [vmem:[%s588 + $0x50] sm:$0xff]
        %v600 = vld [vmem:[%s588 + $0x58] sm:$0xff]
        %v601 = vld [vmem:[%s588 + $0x60] sm:$0xff]
        %v602 = vld [vmem:[%s588 + $0x68] sm:$0xff]
        %v603 = vld [vmem:[%s588 + $0x70] sm:$0xff]
        %v604 = vld [vmem:[%s588 + $0x78] sm:$0xff]
        %605 = vmatprep.subr.mxu0 0.0
        %606 = vmatpush1.msra.mxu0 %v589
        %607 = vmatprep.subr.mxu0 0.0
        %608 = vmatpush1.msra.mxu0 %v590
        %609 = vmatprep.subr.mxu0 0.0
        %610 = vmatpush1.msra.mxu0 %v591
        %611 = vmatprep.subr.mxu0 0.0
        %612 = vmatpush1.msra.mxu0 %v592
        %613 = vmatprep.subr.mxu0 0.0
        %614 = vmatpush1.msra.mxu0 %v593
        %615 = vmatprep.subr.mxu0 0.0
        %616 = vmatpush1.msra.mxu0 %v594
        %617 = vmatprep.subr.mxu0 0.0
        %618 = vmatpush1.msra.mxu0 %v595
        %619 = vmatprep.subr.mxu0 0.0
        %620 = vmatpush1.msra.mxu0 %v596
        %621 = vmatprep.subr.mxu0 0.0
        %622 = vmatpush1.msra.mxu0 %v597
        %623 = vmatprep.subr.mxu0 0.0
        %624 = vmatpush1.msra.mxu0 %v598
        %625 = vmatprep.subr.mxu0 0.0
        %626 = vmatpush1.msra.mxu0 %v599
        %627 = vmatprep.subr.mxu0 0.0
        %628 = vmatpush1.msra.mxu0 %v600
        %629 = vmatprep.subr.mxu0 0.0
        %630 = vmatpush1.msra.mxu0 %v601
        %631 = vmatprep.subr.mxu0 0.0
        %632 = vmatpush1.msra.mxu0 %v602
        %633 = vmatprep.subr.mxu0 0.0
        %634 = vmatpush1.msra.mxu0 %v603
        %635 = vmatprep.subr.mxu0 0.0
        %636 = vmatpush1.msra.mxu0 %v604
        %637 = vmatprep.subr.mxu0 0.0
        %638 = vmatpush1.msra.mxu0 0.0
        %639 = vmatprep.subr.mxu0 0.0
        %640 = vmatpush1.msra.mxu0 0.0
        %641 = vmatprep.subr.mxu0 0.0
        %642 = vmatpush1.msra.mxu0 0.0
        %643 = vmatprep.subr.mxu0 0.0
        %644 = vmatpush1.msra.mxu0 0.0
        %645 = vmatprep.subr.mxu0 0.0
        %646 = vmatpush1.msra.mxu0 0.0
        %647 = vmatprep.subr.mxu0 0.0
        %648 = vmatpush1.msra.mxu0 0.0
        %649 = vmatprep.subr.mxu0 0.0
        %650 = vmatpush1.msra.mxu0 0.0
        %651 = vmatprep.subr.mxu0 0.0
        %652 = vmatpush1.msra.mxu0 0.0
        %653 = vmatprep.subr.mxu0 0.0
        %654 = vmatpush1.msra.mxu0 0.0
        %655 = vmatprep.subr.mxu0 0.0
        %656 = vmatpush1.msra.mxu0 0.0
        %657 = vmatprep.subr.mxu0 0.0
        %658 = vmatpush1.msra.mxu0 0.0
        %659 = vmatprep.subr.mxu0 0.0
        %660 = vmatpush1.msra.mxu0 0.0
        %661 = vmatprep.subr.mxu0 0.0
        %662 = vmatpush1.msra.mxu0 0.0
        %663 = vmatprep.subr.mxu0 0.0
        %664 = vmatpush1.msra.mxu0 0.0
        %665 = vmatprep.subr.mxu0 0.0
        %666 = vmatpush1.msra.mxu0 0.0
        %667 = vmatprep.subr.mxu0 0.0
        %668 = vmatpush1.msra.mxu0 0.0
        %669 = vmatprep.mubr.f32.mxu0 0.0
        %670 = vmatmul.mubr.f32.gmra.mrb[0].mxu0 %v586
        %v671 = vpop.f32.mrb[0].mxu0
        %v672 = vadd.f32 0.0, %v671
        %v673 = vpop.f32.mrb[0].mxu0
        %674 = vmatprep.mubr.f32.mxu0 0.0
        %675 = vmatmul.mubr.f32.gmra.mrb[0].mxu0 %v587
        %v676 = vpop.f32.mrb[0].mxu0
        %v677 = vadd.f32 0.0, %v676
        %v678 = vpop.f32.mrb[0].mxu0
        %679 = vdwg.mxu0
        %680 = vmatprep.subr.mxu0 0.0
        %681 = vmatpush1.msra.mxu0 %v570
        %682 = vmatprep.subr.mxu0 0.0
        %683 = vmatpush1.msra.mxu0 %v571
        %684 = vmatprep.subr.mxu0 0.0
        %685 = vmatpush1.msra.mxu0 %v572
        %686 = vmatprep.subr.mxu0 0.0
        %687 = vmatpush1.msra.mxu0 %v573
        %688 = vmatprep.subr.mxu0 0.0
        %689 = vmatpush1.msra.mxu0 %v574
        %690 = vmatprep.subr.mxu0 0.0
        %691 = vmatpush1.msra.mxu0 %v575
        %692 = vmatprep.subr.mxu0 0.0
        %693 = vmatpush1.msra.mxu0 %v576
        %694 = vmatprep.subr.mxu0 0.0
        %695 = vmatpush1.msra.mxu0 %v577
        %696 = vmatprep.subr.mxu0 0.0
        %697 = vmatpush1.msra.mxu0 %v578
        %698 = vmatprep.subr.mxu0 0.0
        %699 = vmatpush1.msra.mxu0 %v579
        %700 = vmatprep.subr.mxu0 0.0
        %701 = vmatpush1.msra.mxu0 %v580
        %702 = vmatprep.subr.mxu0 0.0
        %703 = vmatpush1.msra.mxu0 %v581
        %704 = vmatprep.subr.mxu0 0.0
        %705 = vmatpush1.msra.mxu0 %v582
        %706 = vmatprep.subr.mxu0 0.0
        %707 = vmatpush1.msra.mxu0 %v583
        %708 = vmatprep.subr.mxu0 0.0
        %709 = vmatpush1.msra.mxu0 %v584
        %710 = vmatprep.subr.mxu0 0.0
        %711 = vmatpush1.msra.mxu0 %v585
        %712 = vmatprep.subr.mxu0 0.0
        %713 = vmatpush1.msra.mxu0 0.0
        %714 = vmatprep.subr.mxu0 0.0
        %715 = vmatpush1.msra.mxu0 0.0
        %716 = vmatprep.subr.mxu0 0.0
        %717 = vmatpush1.msra.mxu0 0.0
        %718 = vmatprep.subr.mxu0 0.0
        %719 = vmatpush1.msra.mxu0 0.0
        %720 = vmatprep.subr.mxu0 0.0
        %721 = vmatpush1.msra.mxu0 0.0
        %722 = vmatprep.subr.mxu0 0.0
        %723 = vmatpush1.msra.mxu0 0.0
        %724 = vmatprep.subr.mxu0 0.0
        %725 = vmatpush1.msra.mxu0 0.0
        %726 = vmatprep.subr.mxu0 0.0
        %727 = vmatpush1.msra.mxu0 0.0
        %728 = vmatprep.subr.mxu0 0.0
        %729 = vmatpush1.msra.mxu0 0.0
        %730 = vmatprep.subr.mxu0 0.0
        %731 = vmatpush1.msra.mxu0 0.0
        %732 = vmatprep.subr.mxu0 0.0
        %733 = vmatpush1.msra.mxu0 0.0
        %734 = vmatprep.subr.mxu0 0.0
        %735 = vmatpush1.msra.mxu0 0.0
        %736 = vmatprep.subr.mxu0 0.0
        %737 = vmatpush1.msra.mxu0 0.0
        %738 = vmatprep.subr.mxu0 0.0
        %739 = vmatpush1.msra.mxu0 0.0
        %740 = vmatprep.subr.mxu0 0.0
        %741 = vmatpush1.msra.mxu0 0.0
        %742 = vmatprep.subr.mxu0 0.0
        %743 = vmatpush1.msra.mxu0 0.0
        %744 = vmatprep.mubr.f32.mxu0 0.0
        %745 = vmatmul.mubr.f32.gmra.mrb[0].mxu0 %v568
        %v746 = vpop.f32.mrb[0].mxu0
        %v747 = vadd.f32 %v672, %v746
        %v748 = vpop.f32.mrb[0].mxu0
        %749 = vmatprep.mubr.f32.mxu0 0.0
        %750 = vmatmul.mubr.f32.gmra.mrb[0].mxu0 %v569
        %v751 = vpop.f32.mrb[0].mxu0
        %v752 = vadd.f32 %v677, %v751
        %v753 = vpop.f32.mrb[0].mxu0
        %754 = vdwg.mxu0
        %v755 = vld [vmem:[#allocation2 + $0x2] sm:$0xff]
        %v756 = vld [vmem:[#allocation2 + $0xa] sm:$0xff]
        %s757 = scalar_lea.vmem [#allocation6], 256
        %v758 = vld [vmem:[%s757] sm:$0xff]
        %v759 = vld [vmem:[%s757 + $0x8] sm:$0xff]
        %v760 = vld [vmem:[%s757 + $0x10] sm:$0xff]
        %v761 = vld [vmem:[%s757 + $0x18] sm:$0xff]
        %v762 = vld [vmem:[%s757 + $0x20] sm:$0xff]
        %v763 = vld [vmem:[%s757 + $0x28] sm:$0xff]
        %v764 = vld [vmem:[%s757 + $0x30] sm:$0xff]
        %v765 = vld [vmem:[%s757 + $0x38] sm:$0xff]
        %v766 = vld [vmem:[%s757 + $0x40] sm:$0xff]
        %v767 = vld [vmem:[%s757 + $0x48] sm:$0xff]
        %v768 = vld [vmem:[%s757 + $0x50] sm:$0xff]
        %v769 = vld [vmem:[%s757 + $0x58] sm:$0xff]
        %v770 = vld [vmem:[%s757 + $0x60] sm:$0xff]
        %v771 = vld [vmem:[%s757 + $0x68] sm:$0xff]
        %v772 = vld [vmem:[%s757 + $0x70] sm:$0xff]
        %v773 = vld [vmem:[%s757 + $0x78] sm:$0xff]
        %774 = vmatprep.subr.mxu0 0.0
        %775 = vmatpush1.msra.mxu0 %v758
        %776 = vmatprep.subr.mxu0 0.0
        %777 = vmatpush1.msra.mxu0 %v759
        %778 = vmatprep.subr.mxu0 0.0
        %779 = vmatpush1.msra.mxu0 %v760
        %780 = vmatprep.subr.mxu0 0.0
        %781 = vmatpush1.msra.mxu0 %v761
        %782 = vmatprep.subr.mxu0 0.0
        %783 = vmatpush1.msra.mxu0 %v762
        %784 = vmatprep.subr.mxu0 0.0
        %785 = vmatpush1.msra.mxu0 %v763
        %786 = vmatprep.subr.mxu0 0.0
        %787 = vmatpush1.msra.mxu0 %v764
        %788 = vmatprep.subr.mxu0 0.0
        %789 = vmatpush1.msra.mxu0 %v765
        %790 = vmatprep.subr.mxu0 0.0
        %791 = vmatpush1.msra.mxu0 %v766
        %792 = vmatprep.subr.mxu0 0.0
        %793 = vmatpush1.msra.mxu0 %v767
        %794 = vmatprep.subr.mxu0 0.0
        %795 = vmatpush1.msra.mxu0 %v768
        %796 = vmatprep.subr.mxu0 0.0
        %797 = vmatpush1.msra.mxu0 %v769
        %798 = vmatprep.subr.mxu0 0.0
        %799 = vmatpush1.msra.mxu0 %v770
        %800 = vmatprep.subr.mxu0 0.0
        %801 = vmatpush1.msra.mxu0 %v771
        %802 = vmatprep.subr.mxu0 0.0
        %803 = vmatpush1.msra.mxu0 %v772
        %804 = vmatprep.subr.mxu0 0.0
        %805 = vmatpush1.msra.mxu0 %v773
        %806 = vmatprep.subr.mxu0 0.0
        %807 = vmatpush1.msra.mxu0 0.0
        %808 = vmatprep.subr.mxu0 0.0
        %809 = vmatpush1.msra.mxu0 0.0
        %810 = vmatprep.subr.mxu0 0.0
        %811 = vmatpush1.msra.mxu0 0.0
        %812 = vmatprep.subr.mxu0 0.0
        %813 = vmatpush1.msra.mxu0 0.0
        %814 = vmatprep.subr.mxu0 0.0
        %815 = vmatpush1.msra.mxu0 0.0
        %816 = vmatprep.subr.mxu0 0.0
        %817 = vmatpush1.msra.mxu0 0.0
        %818 = vmatprep.subr.mxu0 0.0
        %819 = vmatpush1.msra.mxu0 0.0
        %820 = vmatprep.subr.mxu0 0.0
        %821 = vmatpush1.msra.mxu0 0.0
        %822 = vmatprep.subr.mxu0 0.0
        %823 = vmatpush1.msra.mxu0 0.0
        %824 = vmatprep.subr.mxu0 0.0
        %825 = vmatpush1.msra.mxu0 0.0
        %826 = vmatprep.subr.mxu0 0.0
        %827 = vmatpush1.msra.mxu0 0.0
        %828 = vmatprep.subr.mxu0 0.0
        %829 = vmatpush1.msra.mxu0 0.0
        %830 = vmatprep.subr.mxu0 0.0
        %831 = vmatpush1.msra.mxu0 0.0
        %832 = vmatprep.subr.mxu0 0.0
        %833 = vmatpush1.msra.mxu0 0.0
        %834 = vmatprep.subr.mxu0 0.0
        %835 = vmatpush1.msra.mxu0 0.0
        %836 = vmatprep.subr.mxu0 0.0
        %837 = vmatpush1.msra.mxu0 0.0
        %838 = vmatprep.mubr.f32.mxu0 0.0
        %839 = vmatmul.mubr.f32.gmra.mrb[0].mxu0 %v755
        %v840 = vpop.f32.mrb[0].mxu0
        %v841 = vadd.f32 0.0, %v840
        %v842 = vpop.f32.mrb[0].mxu0
        %843 = vmatprep.mubr.f32.mxu0 0.0
        %844 = vmatmul.mubr.f32.gmra.mrb[0].mxu0 %v756
        %v845 = vpop.f32.mrb[0].mxu0
        %v846 = vadd.f32 0.0, %v845
        %v847 = vpop.f32.mrb[0].mxu0
        %848 = vdwg.mxu0
        %v849 = vadd.f32 %v747, %v841
        %v850 = vadd.f32 %v752, %v846
        %v851 = vld [vmem:[%s4] sm:$0x1]
        %v852 = vlaneseq
        %v853 = vshrl.u32 %v852, 7
        %v854 = vsub.s32 0, %v853
        %v855 = vrot.slane %v851, %v854
        %v856 = vadd.f32 %v849, %v855
        %v857 = vadd.f32 %v850, %v855
        %vm858 = vcmp.ge.f32.partialorder %v856, 0.0
        %vm859 = vcmp.ge.f32.partialorder %v857, 0.0
        %v860 = vmul.f32 %v856, 0.1
        %v861 = vmul.f32 %v857, 0.1
        %v862 = vsel %vm858, %v856, %v860
        %v863 = vsel %vm859, %v857, %v861
        %v864 = vld [vmem:[%s4 + $0x1] sm:$0x1]
        %v865 = vlaneseq
        %v866 = vshrl.u32 %v865, 7
        %v867 = vsub.s32 0, %v866
        %v868 = vrot.slane %v864, %v867
        %v869 = vmul.f32 %v862, %v868
        %v870 = vmul.f32 %v863, %v868
        %v871 = vld [vmem:[%s4 + $0x2] sm:$0x1]
        %v872 = vlaneseq
        %v873 = vshrl.u32 %v872, 7
        %v874 = vsub.s32 0, %v873
        %v875 = vrot.slane %v871, %v874
        %v876 = vadd.f32 %v869, %v875
        %v877 = vadd.f32 %v870, %v875
        %878 = vst [vmem:[%s247] sm:$0xff] %v876
        %879 = vst [vmem:[%s247 + $0x8] sm:$0xff] %v877
        %s880 = sand.u32 %s139, 1
        %s881 = scalar_lea.sflag [#allocation5], %s880
        %s882 = sand.u32 %s139, 1
        %s883 = smul.addr %s882, 16
        %s884 = scalar_lea.vmem [#allocation8], %s883
        // Predicated region
        $region49: #{tpu_custom_call.1} parent=39 // pred_check
          %p885 = pneg %p149
        $region50: #{tpu_custom_call.1} parent=39 // pred_check_branch
          %887 = sbr.rel (%p885) target = $region52
        $region51: #{tpu_custom_call.1} parent=39 // pred_region
          %s889 = ssub.s32 256, 256
          %890 = vsyncadd %s881, %s889
          %s891 = smul.addr %s21, 2
          %s892 = smul.addr %s891, 128
          %s893 = scalar_lea.hbm %s5, %s892
          %s894 = sshll.u32 %s884, 4
          %s895 = int_to_ptr.vmem [resolvable:$true] %s894
          %900 = dma.vmem_to_hbm [thread:$0]  %s895, 256, %s893, %s881, 128, 128, 8
        $region52: #{tpu_custom_call.1} parent=39 // pred_fallthru
          _
      $region40: #{tpu_custom_call.1} parent=5 // pred_fallthru
        _
      %p901 = scmp.le.s32.totalorder 2, %s16
      // Predicated region
      $region53: #{tpu_custom_call.1} parent=5 // pred_check
        %p902 = pneg %p901
      $region54: #{tpu_custom_call.1} parent=5 // pred_check_branch
        %904 = sbr.rel (%p902) target = $region56
      $region55: #{tpu_custom_call.1} parent=5 // pred_region
        %s905 = ssub.s32 %s16, 2
        // Predicated region
        $region57: #{tpu_custom_call.1} parent=55 // pred_check
          %p906 = pneg %p155
        $region58: #{tpu_custom_call.1} parent=55 // pred_check_branch
          %908 = sbr.rel (%p906) target = $region60
        $region59: #{tpu_custom_call.1} parent=55 // pred_region
          %s909 = sand.u32 %s140, 1
          %s910 = scalar_lea.sflag [#allocation5], %s909
          %s911 = sand.u32 %s140, 1
          %s912 = smul.addr %s911, 16
          %s913 = scalar_lea.vmem [#allocation8], %s912
          %914 = dma.done %s910, 256
        $region60: #{tpu_custom_call.1} parent=55 // pred_fallthru
          _
      $region56: #{tpu_custom_call.1} parent=5 // pred_fallthru
        _
    $region6: #{tpu_custom_call.1} parent=1 // loop_footer
      %s20 = sadd.s32 1, %s16
    $region7: #{tpu_custom_call.1} parent=1 // loop_footer_branch
      %15 = sbr.rel target = $region3
    $region8: #{tpu_custom_call.1} parent=1 // loop_exit
      _
    %915 = vsyncpa [#allocation4], 1
    %s916 = scalar_lea.sflag [#allocation4], 1
    %917 = vsyncpa %s916, 1
    %918 = vsyncpa [#allocation7], 1
    %919 = vsyncpa [#allocation5], 1
    %s920 = scalar_lea.sflag [#allocation5], 1
    %921 = vsyncpa %s920, 1

</llo_original>
